<compile_context>
chip_gen: v7x
topology: tpu7x:2x2x1
jax: 0.10.0
libtpu: 0.0.40
codegen_flags: <defaults>
</compile_context>

<pallas_src>
import functools

import jax
import jax.numpy as jnp
from jax.experimental import pallas as pl
from jax.experimental.pallas import tpu as pltpu


def _focal_loss_kernel(loc_p_ref, loc_t_ref, cls_p_ref, cls_t_ref,
                       npos_ref, loc_ref, cls_ref,
                       *, alpha, gamma, num_classes, pack, num_rows,
                       tile_rows, sub, need_mask):
    C, k = num_classes, pack
    W, L = k * C, 4 * k
    f32 = jnp.float32
    i = pl.program_id(0)

    @pl.when(i == 0)
    def _init():
        npos_ref[...] = jnp.zeros_like(npos_ref)
        loc_ref[...] = jnp.zeros_like(loc_ref)
        cls_ref[...] = jnp.zeros_like(cls_ref)

    tgt = cls_t_ref[...]                                        # (T, k) int32
    if need_mask:
        rows = i * tile_rows + jax.lax.broadcasted_iota(
            jnp.int32, (tile_rows, 1), 0)                       # (T, 1)
        tgt = jnp.where(rows < num_rows, tgt, -1)               # tail -> ignore
    pos_k = (tgt > 0).astype(f32)                               # (T, k)
    valid_k = (tgt > -1).astype(f32)                            # (T, k)

    lane_w = jax.lax.broadcasted_iota(jnp.int32, (1, W), 1)     # (1, W)
    if k > 1:
        # Constant 0/1 replication matrices built from iota (no div/mod):
        # rep_c[a, l] = 1 iff lane l is one of anchor a's C class lanes.
        lw = jax.lax.broadcasted_iota(jnp.int32, (k, W), 1)
        lo_w = jax.lax.broadcasted_iota(jnp.int32, (k, W), 0) * C
        rep_c = ((lw >= lo_w) & (lw < lo_w + C)).astype(f32)    # (k, W)
        ll = jax.lax.broadcasted_iota(jnp.int32, (k, L), 1)
        lo_l = jax.lax.broadcasted_iota(jnp.int32, (k, L), 0) * 4
        rep_l = ((ll >= lo_l) & (ll < lo_l + 4)).astype(f32)    # (k, L)
        # Per-anchor "hot lane" code a*C + y, replicated to its lanes on MXU.
        base = (jax.lax.broadcasted_iota(jnp.int32, (1, k), 1) * C).astype(f32)
        hot_w = jnp.dot(tgt.astype(f32) + base, rep_c,
                        preferred_element_type=f32)             # (T, W)
        valid_w = jnp.dot(valid_k, rep_c,
                          preferred_element_type=f32) > 0.5     # (T, W) bool
        pos_l = jnp.dot(pos_k, rep_l,
                        preferred_element_type=f32) > 0.5       # (T, L) bool
        t = (hot_w == (lane_w + 1).astype(f32)).astype(f32)     # one_hot[:, 1:]
    else:
        tgt_f = tgt.astype(f32)                                 # (T, 1)
        valid_w = tgt_f > -0.5                                  # lane-broadcasts
        pos_l = tgt_f > 0.5
        t = (tgt_f == (lane_w + 1).astype(f32)).astype(f32)     # (T, W)

    # ---- SmoothL1 (beta = 1) over positive anchors --------------------------
    d = loc_p_ref[...].astype(f32) - loc_t_ref[...].astype(f32)
    ad = jnp.abs(d)
    sl1 = jnp.where(ad < 1.0, 0.5 * d * d, ad - 0.5)            # (T, L)
    sl1 = jnp.where(pos_l, sl1, 0.0)                            # select: NaN-safe

    # ---- sigmoid focal loss over labels > -1 --------------------------------
    x = jnp.where(valid_w, cls_p_ref[...].astype(f32), 0.0)     # (T, W) NaN-safe
    xt = x * (2.0 * t - 1.0)
    # -log(pt) = softplus(-xt); stable, built from exp/log/max/abs only.
    nll = jnp.maximum(-xt, 0.0) + jnp.log(1.0 + jnp.exp(-jnp.abs(xt)))
    log1mpt = -(nll + xt)                                       # = log(1 - pt)
    if float(gamma) == 2.0:                                     # static fast path
        e = jnp.exp(log1mpt)
        mod = e * e                                             # (1 - pt)^2
    else:
        mod = jnp.exp(gamma * log1mpt)                          # (1 - pt)^gamma
    w_alpha = (1.0 - alpha) + (2.0 * alpha - 1.0) * t
    fl = jnp.where(valid_w, w_alpha * mod * nll, 0.0)           # (T, W)

    # ---- vreg-shaped partial sums: pure sublane-group vreg adds -------------
    npos_ref[...] += jnp.sum(pos_k.reshape(-1, sub, k), axis=0)
    loc_ref[...] += jnp.sum(sl1.reshape(-1, sub, L), axis=0)
    cls_ref[...] += jnp.sum(fl.reshape(-1, sub, W), axis=0)


def focal_loss_forward(loc_preds, loc_targets, cls_preds, cls_targets, *,
                       num_classes, alpha=0.25, gamma=2.0, tile_rows=1024):
    """Equivalent of FocalLoss.forward. Returns (loss, loc_loss, cls_loss)."""
    B, A, C = cls_preds.shape
    assert C == num_classes
    assert cls_targets.shape == (B, A)
    N = B * A

    # Lane-dense packing factor: k anchors share one packed row of k*C lanes.
    k = max(1, 128 // C)
    while k > 1 and N % k:
        k -= 1
    M, W, L = N // k, k * C, 4 * k

    # Row-major contiguous reshapes: free, no extra HBM pass (no concat/pad).
    loc_p = loc_preds.reshape(M, L)
    loc_t = loc_targets.reshape(M, L)
    cls_p = cls_preds.reshape(M, W)
    cls_t = cls_targets.reshape(M, k).astype(jnp.int32)

    # Tile sizing: multiple of 8 packed rows, capped so the four double-buffered
    # (lane-padded) f32 input streams stay at a few MiB of VMEM on all chips.
    pad128 = lambda w: -(-w // 128) * 128
    bytes_per_row = 4 * (pad128(W) + 2 * pad128(L) + pad128(k))
    cap = max(8, ((2 << 20) // bytes_per_row) // 8 * 8)
    tile = max(8, (min(int(tile_rows), cap) // 8) * 8)
    if M <= tile:
        tile = M                       # single block == full array (always legal)
        grid_steps = 1
    else:
        grid_steps = -(-M // tile)     # ragged last block -> masked in-kernel
    sub = 8 if tile % 8 == 0 else 1
    need_mask = grid_steps * tile != M

    kernel = functools.partial(
        _focal_loss_kernel, alpha=float(alpha), gamma=float(gamma),
        num_classes=C, pack=k, num_rows=M, tile_rows=tile, sub=sub,
        need_mask=need_mask)

    row_map = lambda i: (i, 0)
    acc_map = lambda i: (0, 0)   # outputs resident across the grid = accumulators
    npos, loc_part, cls_part = pl.pallas_call(
        kernel,
        out_shape=(jax.ShapeDtypeStruct((sub, k), jnp.float32),
                   jax.ShapeDtypeStruct((sub, L), jnp.float32),
                   jax.ShapeDtypeStruct((sub, W), jnp.float32)),
        grid_spec=pltpu.PrefetchScalarGridSpec(
            num_scalar_prefetch=0,
            grid=(grid_steps,),
            in_specs=[
                pl.BlockSpec((tile, L), row_map),
                pl.BlockSpec((tile, L), row_map),
                pl.BlockSpec((tile, W), row_map),
                pl.BlockSpec((tile, k), row_map),
            ],
            out_specs=(
                pl.BlockSpec((sub, k), acc_map),
                pl.BlockSpec((sub, L), acc_map),
                pl.BlockSpec((sub, W), acc_map),
            ),
        ),
        compiler_params=pltpu.CompilerParams(
            dimension_semantics=("arbitrary",)),
    )(loc_p, loc_t, cls_p, cls_t)

    num_pos = jnp.sum(npos)
    loc_total = jnp.sum(loc_part)
    cls_total = jnp.sum(cls_part)
    has_pos = num_pos > 0
    safe = jnp.where(has_pos, num_pos, 1.0)
    loc_loss = jnp.where(has_pos, loc_total / safe, 0.0)
    cls_loss = jnp.where(has_pos, cls_total / safe, 0.0)
    return loc_loss + cls_loss, loc_loss, cls_loss


def _reference(loc_preds, loc_targets, cls_preds, cls_targets, *,
               num_classes, alpha=0.25, gamma=2.0):
    """Pure-JAX reference mirroring the PyTorch forward."""
    lp = loc_preds.astype(jnp.float32)
    lt = loc_targets.astype(jnp.float32)
    x = cls_preds.astype(jnp.float32)
    pos = cls_targets > 0
    num_pos = jnp.sum(pos).astype(jnp.float32)
    d = lp - lt
    ad = jnp.abs(d)
    sl1 = jnp.where(ad < 1.0, 0.5 * d * d, ad - 0.5)
    loc_sum = jnp.sum(sl1 * pos[..., None])
    valid = cls_targets > -1
    t = jax.nn.one_hot(cls_targets, num_classes + 1)[..., 1:]
    p = jax.nn.sigmoid(x)
    pt = p * t + (1 - p) * (1 - t)
    w = (alpha * t + (1 - alpha) * (1 - t)) * (1 - pt) ** gamma
    cls_sum = jnp.sum((-w * jnp.log(pt)) * valid[..., None])
    has_pos = num_pos > 0
    safe = jnp.where(has_pos, num_pos, 1.0)
    loc_loss = jnp.where(has_pos, loc_sum / safe, 0.0)
    cls_loss = jnp.where(has_pos, cls_sum / safe, 0.0)
    return loc_loss + cls_loss, loc_loss, cls_loss


if __name__ == "__main__":
    key = jax.random.PRNGKey(0)
    cases = [
        # lane-dense pack (k=8, W=128), single grid step
        dict(B=2, A=64, C=16, gamma=2.0, tile_rows=1024),
        # multi-step grid with a ragged last block (M=18, tile=8) -> tail mask
        dict(B=2, A=72, C=16, gamma=2.0, tile_rows=8),
        # general-gamma (exp-based) path
        dict(B=2, A=64, C=16, gamma=1.5, tile_rows=1024),
    ]
    for cfg in cases:
        key, k1, k2, k3, k4 = jax.random.split(key, 5)
        B, A, C = cfg["B"], cfg["A"], cfg["C"]
        loc_preds = jax.random.normal(k1, (B, A, 4), jnp.float32)
        loc_targets = jax.random.normal(k2, (B, A, 4), jnp.float32)
        cls_preds = jax.random.normal(k3, (B, A, C), jnp.float32)
        # labels in [-1, C]: -1 ignore, 0 background, 1..C positive classes
        cls_targets = jax.random.randint(k4, (B, A), -1, C + 1, jnp.int32)

        got = focal_loss_forward(
            loc_preds, loc_targets, cls_preds, cls_targets,
            num_classes=C, gamma=cfg["gamma"], tile_rows=cfg["tile_rows"])
        jax.block_until_ready(got)

        want = _reference(loc_preds, loc_targets, cls_preds, cls_targets,
                          num_classes=C, gamma=cfg["gamma"])
        for g, w in zip(got, want):
            assert jnp.allclose(g, w, rtol=2e-4, atol=2e-4), (cfg, g, w)

    print("KERNEL_OK")
</pallas_src>

<mosaic_0001>
module attributes {stable_mosaic.version = 11 : i64} {
  func.func @_focal_loss_kernel(%arg0: i32, %arg1: memref<16x32xf32, #tpu.memory_space<vmem>>, %arg2: memref<16x32xf32, #tpu.memory_space<vmem>>, %arg3: memref<16x128xf32, #tpu.memory_space<vmem>>, %arg4: memref<16x8xi32, #tpu.memory_space<vmem>>, %arg5: memref<8x8xf32, #tpu.memory_space<vmem>>, %arg6: memref<8x32xf32, #tpu.memory_space<vmem>>, %arg7: memref<8x128xf32, #tpu.memory_space<vmem>>) attributes {dimension_semantics = [#tpu.dimension_semantics<arbitrary>], iteration_bounds = array<i64: 1>, scalar_prefetch = 0 : i64, scratch_operands = 0 : i64, tpu.core_type = #tpu.core_type<tc>, window_params = [{transform_indices = @transform_0, window_bounds = array<i64: 16, 32>}, {transform_indices = @transform_1, window_bounds = array<i64: 16, 32>}, {transform_indices = @transform_2, window_bounds = array<i64: 16, 128>}, {transform_indices = @transform_3, window_bounds = array<i64: 16, 8>}, {pipeline_mode = #tpu.pipeline_mode<synchronous>, transform_indices = @transform_4, window_bounds = array<i64: 8, 8>}, {pipeline_mode = #tpu.pipeline_mode<synchronous>, transform_indices = @transform_5, window_bounds = array<i64: 8, 32>}, {pipeline_mode = #tpu.pipeline_mode<synchronous>, transform_indices = @transform_6, window_bounds = array<i64: 8, 128>}]} {
    %c0_i32 = arith.constant 0 : i32
    %0 = arith.cmpi eq, %arg0, %c0_i32 : i32
    %1 = arith.extui %0 : i1 to i32
    %c0_i32_0 = arith.constant 0 : i32
    %2 = arith.cmpi ne, %1, %c0_i32_0 : i32
    scf.if %2 {
      %cst_46 = arith.constant 0.000000e+00 : f32
      %118 = vector.broadcast %cst_46 : f32 to vector<8x8xf32>
      %c0_47 = arith.constant 0 : index
      %c0_48 = arith.constant 0 : index
      %119 = vector.load %arg5[%c0_47, %c0_48] : memref<8x8xf32, #tpu.memory_space<vmem>>, vector<8x8xf32>
      tpu.vector_store %arg5[%c0_47, %c0_48], %118 {strides = array<i32>} : memref<8x8xf32, #tpu.memory_space<vmem>>, vector<8x8xf32>,
      %cst_49 = arith.constant 0.000000e+00 : f32
      %120 = vector.broadcast %cst_49 : f32 to vector<8x32xf32>
      %c0_50 = arith.constant 0 : index
      %c0_51 = arith.constant 0 : index
      %121 = vector.load %arg6[%c0_50, %c0_51] : memref<8x32xf32, #tpu.memory_space<vmem>>, vector<8x32xf32>
      tpu.vector_store %arg6[%c0_50, %c0_51], %120 {strides = array<i32>} : memref<8x32xf32, #tpu.memory_space<vmem>>, vector<8x32xf32>,
      %cst_52 = arith.constant 0.000000e+00 : f32
      %122 = vector.broadcast %cst_52 : f32 to vector<8x128xf32>
      %c0_53 = arith.constant 0 : index
      %c0_54 = arith.constant 0 : index
      %123 = vector.load %arg7[%c0_53, %c0_54] : memref<8x128xf32, #tpu.memory_space<vmem>>, vector<8x128xf32>
      tpu.vector_store %arg7[%c0_53, %c0_54], %122 {strides = array<i32>} : memref<8x128xf32, #tpu.memory_space<vmem>>, vector<8x128xf32>,
    } else {
    }
    %c0 = arith.constant 0 : index
    %c0_1 = arith.constant 0 : index
    %3 = vector.load %arg4[%c0, %c0_1] : memref<16x8xi32, #tpu.memory_space<vmem>>, vector<16x8xi32>
    %c0_i32_2 = arith.constant 0 : i32
    %4 = vector.broadcast %c0_i32_2 : i32 to vector<16x8xi32>
    %5 = arith.cmpi sgt, %3, %4 : vector<16x8xi32>
    %6 = arith.extui %5 : vector<16x8xi1> to vector<16x8xi32>
    %7 = arith.sitofp %6 : vector<16x8xi32> to vector<16x8xf32>
    %c-1_i32 = arith.constant -1 : i32
    %8 = vector.broadcast %c-1_i32 : i32 to vector<16x8xi32>
    %9 = arith.cmpi sgt, %3, %8 : vector<16x8xi32>
    %10 = arith.extui %9 : vector<16x8xi1> to vector<16x8xi32>
    %11 = arith.sitofp %10 : vector<16x8xi32> to vector<16x8xf32>
    %12 = tpu.iota {dimensions = array<i32: 1>} : vector<1x128xi32>
    %13 = tpu.iota {dimensions = array<i32: 1>} : vector<8x128xi32>
    %14 = tpu.iota {dimensions = array<i32: 0>} : vector<8x128xi32>
    %c16_i32 = arith.constant 16 : i32
    %15 = vector.broadcast %c16_i32 : i32 to vector<8x128xi32>
    %16 = arith.muli %14, %15 : vector<8x128xi32>
    %17 = arith.cmpi sge, %13, %16 : vector<8x128xi32>
    %c16_i32_3 = arith.constant 16 : i32
    %18 = vector.broadcast %c16_i32_3 : i32 to vector<8x128xi32>
    %19 = arith.addi %16, %18 : vector<8x128xi32>
    %20 = arith.cmpi slt, %13, %19 : vector<8x128xi32>
    %21 = arith.andi %17, %20 : vector<8x128xi1>
    %22 = arith.extui %21 : vector<8x128xi1> to vector<8x128xi32>
    %23 = arith.sitofp %22 : vector<8x128xi32> to vector<8x128xf32>
    %24 = tpu.iota {dimensions = array<i32: 1>} : vector<8x32xi32>
    %25 = tpu.iota {dimensions = array<i32: 0>} : vector<8x32xi32>
    %c4_i32 = arith.constant 4 : i32
    %26 = vector.broadcast %c4_i32 : i32 to vector<8x32xi32>
    %27 = arith.muli %25, %26 : vector<8x32xi32>
    %28 = arith.cmpi sge, %24, %27 : vector<8x32xi32>
    %c4_i32_4 = arith.constant 4 : i32
    %29 = vector.broadcast %c4_i32_4 : i32 to vector<8x32xi32>
    %30 = arith.addi %27, %29 : vector<8x32xi32>
    %31 = arith.cmpi slt, %24, %30 : vector<8x32xi32>
    %32 = arith.andi %28, %31 : vector<8x32xi1>
    %33 = arith.extui %32 : vector<8x32xi1> to vector<8x32xi32>
    %34 = arith.sitofp %33 : vector<8x32xi32> to vector<8x32xf32>
    %35 = tpu.iota {dimensions = array<i32: 1>} : vector<1x8xi32>
    %c16_i32_5 = arith.constant 16 : i32
    %36 = vector.broadcast %c16_i32_5 : i32 to vector<1x8xi32>
    %37 = arith.muli %35, %36 : vector<1x8xi32>
    %38 = arith.sitofp %37 : vector<1x8xi32> to vector<1x8xf32>
    %39 = arith.sitofp %3 : vector<16x8xi32> to vector<16x8xf32>
    %40 = vector.broadcast %38 : vector<1x8xf32> to vector<16x8xf32>
    %41 = arith.addf %39, %40 : vector<16x8xf32>
    %cst = arith.constant dense<0.000000e+00> : vector<16x128xf32>
    %42 = tpu.matmul %41, %23, %cst {dimension_numbers = #tpu.dot_dimension_numbers<[1], [0], [0], [1], [0, 0, 1, 1], [], []>} : vector<16x8xf32>, vector<8x128xf32>, vector<16x128xf32> -> vector<16x128xf32>
    %cst_6 = arith.constant dense<0.000000e+00> : vector<16x128xf32>
    %43 = tpu.matmul %11, %23, %cst_6 {dimension_numbers = #tpu.dot_dimension_numbers<[1], [0], [0], [1], [0, 0, 1, 1], [], []>} : vector<16x8xf32>, vector<8x128xf32>, vector<16x128xf32> -> vector<16x128xf32>
    %cst_7 = arith.constant 5.000000e-01 : f32
    %44 = vector.broadcast %cst_7 : f32 to vector<16x128xf32>
    %45 = arith.cmpf ogt, %43, %44 : vector<16x128xf32>
    %cst_8 = arith.constant dense<0.000000e+00> : vector<16x32xf32>
    %46 = tpu.matmul %7, %34, %cst_8 {dimension_numbers = #tpu.dot_dimension_numbers<[1], [0], [0], [1], [0, 0, 1, 1], [], []>} : vector<16x8xf32>, vector<8x32xf32>, vector<16x32xf32> -> vector<16x32xf32>
    %cst_9 = arith.constant 5.000000e-01 : f32
    %47 = vector.broadcast %cst_9 : f32 to vector<16x32xf32>
    %48 = arith.cmpf ogt, %46, %47 : vector<16x32xf32>
    %c1_i32 = arith.constant 1 : i32
    %49 = vector.broadcast %c1_i32 : i32 to vector<1x128xi32>
    %50 = arith.addi %12, %49 : vector<1x128xi32>
    %51 = arith.sitofp %50 : vector<1x128xi32> to vector<1x128xf32>
    %52 = vector.broadcast %51 : vector<1x128xf32> to vector<16x128xf32>
    %53 = arith.cmpf oeq, %42, %52 : vector<16x128xf32>
    %54 = arith.extui %53 : vector<16x128xi1> to vector<16x128xi32>
    %55 = arith.sitofp %54 : vector<16x128xi32> to vector<16x128xf32>
    %c0_10 = arith.constant 0 : index
    %c0_11 = arith.constant 0 : index
    %56 = vector.load %arg1[%c0_10, %c0_11] : memref<16x32xf32, #tpu.memory_space<vmem>>, vector<16x32xf32>
    %c0_12 = arith.constant 0 : index
    %c0_13 = arith.constant 0 : index
    %57 = vector.load %arg2[%c0_12, %c0_13] : memref<16x32xf32, #tpu.memory_space<vmem>>, vector<16x32xf32>
    %58 = arith.subf %56, %57 : vector<16x32xf32>
    %59 = math.absf %58 : vector<16x32xf32>
    %cst_14 = arith.constant 1.000000e+00 : f32
    %60 = vector.broadcast %cst_14 : f32 to vector<16x32xf32>
    %61 = arith.cmpf olt, %59, %60 : vector<16x32xf32>
    %cst_15 = arith.constant 5.000000e-01 : f32
    %62 = vector.broadcast %cst_15 : f32 to vector<16x32xf32>
    %63 = arith.mulf %62, %58 : vector<16x32xf32>
    %64 = arith.mulf %63, %58 : vector<16x32xf32>
    %cst_16 = arith.constant 5.000000e-01 : f32
    %65 = vector.broadcast %cst_16 : f32 to vector<16x32xf32>
    %66 = arith.subf %59, %65 : vector<16x32xf32>
    %67 = arith.select %61, %64, %66 : vector<16x32xi1>, vector<16x32xf32>
    %cst_17 = arith.constant 0.000000e+00 : f32
    %68 = vector.broadcast %cst_17 : f32 to vector<16x32xf32>
    %69 = arith.select %48, %67, %68 : vector<16x32xi1>, vector<16x32xf32>
    %c0_18 = arith.constant 0 : index
    %c0_19 = arith.constant 0 : index
    %70 = vector.load %arg3[%c0_18, %c0_19] : memref<16x128xf32, #tpu.memory_space<vmem>>, vector<16x128xf32>
    %cst_20 = arith.constant 0.000000e+00 : f32
    %71 = vector.broadcast %cst_20 : f32 to vector<16x128xf32>
    %72 = arith.select %45, %70, %71 : vector<16x128xi1>, vector<16x128xf32>
    %cst_21 = arith.constant 2.000000e+00 : f32
    %73 = vector.broadcast %cst_21 : f32 to vector<16x128xf32>
    %74 = arith.mulf %73, %55 : vector<16x128xf32>
    %cst_22 = arith.constant 1.000000e+00 : f32
    %75 = vector.broadcast %cst_22 : f32 to vector<16x128xf32>
    %76 = arith.subf %74, %75 : vector<16x128xf32>
    %77 = arith.mulf %72, %76 : vector<16x128xf32>
    %cst_23 = arith.constant 0.000000e+00 : f32
    %78 = vector.broadcast %cst_23 : f32 to vector<16x128xf32>
    %79 = arith.subf %78, %77 : vector<16x128xf32>
    %cst_24 = arith.constant 0.000000e+00 : f32
    %80 = vector.broadcast %cst_24 : f32 to vector<16x128xf32>
    %81 = arith.maximumf %79, %80 : vector<16x128xf32>
    %82 = math.absf %77 : vector<16x128xf32>
    %cst_25 = arith.constant 0.000000e+00 : f32
    %83 = vector.broadcast %cst_25 : f32 to vector<16x128xf32>
    %84 = arith.subf %83, %82 : vector<16x128xf32>
    %85 = math.exp %84 : vector<16x128xf32>
    %cst_26 = arith.constant 1.000000e+00 : f32
    %86 = vector.broadcast %cst_26 : f32 to vector<16x128xf32>
    %87 = arith.addf %86, %85 : vector<16x128xf32>
    %88 = math.log %87 : vector<16x128xf32>
    %89 = arith.addf %81, %88 : vector<16x128xf32>
    %90 = arith.addf %89, %77 : vector<16x128xf32>
    %cst_27 = arith.constant 0.000000e+00 : f32
    %91 = vector.broadcast %cst_27 : f32 to vector<16x128xf32>
    %92 = arith.subf %91, %90 : vector<16x128xf32>
    %93 = math.exp %92 : vector<16x128xf32>
    %94 = arith.mulf %93, %93 : vector<16x128xf32>
    %cst_28 = arith.constant -5.000000e-01 : f32
    %95 = vector.broadcast %cst_28 : f32 to vector<16x128xf32>
    %96 = arith.mulf %95, %55 : vector<16x128xf32>
    %cst_29 = arith.constant 7.500000e-01 : f32
    %97 = vector.broadcast %cst_29 : f32 to vector<16x128xf32>
    %98 = arith.addf %97, %96 : vector<16x128xf32>
    %99 = arith.mulf %98, %94 : vector<16x128xf32>
    %100 = arith.mulf %99, %89 : vector<16x128xf32>
    %cst_30 = arith.constant 0.000000e+00 : f32
    %101 = vector.broadcast %cst_30 : f32 to vector<16x128xf32>
    %102 = arith.select %45, %100, %101 : vector<16x128xi1>, vector<16x128xf32>
    %c0_31 = arith.constant 0 : index
    %c0_32 = arith.constant 0 : index
    %103 = vector.load %arg5[%c0_31, %c0_32] : memref<8x8xf32, #tpu.memory_space<vmem>>, vector<8x8xf32>
    %104 = vector.shape_cast %7 : vector<16x8xf32> to vector<2x8x8xf32>
    %cst_33 = arith.constant dense<0.000000e+00> : vector<8x8xf32>
    %105 = vector.multi_reduction <add>, %104, %cst_33 [0] : vector<2x8x8xf32> to vector<8x8xf32>
    %106 = arith.addf %103, %105 : vector<8x8xf32>
    %c0_34 = arith.constant 0 : index
    %c0_35 = arith.constant 0 : index
    %107 = vector.load %arg5[%c0_34, %c0_35] : memref<8x8xf32, #tpu.memory_space<vmem>>, vector<8x8xf32>
    tpu.vector_store %arg5[%c0_34, %c0_35], %106 {strides = array<i32>} : memref<8x8xf32, #tpu.memory_space<vmem>>, vector<8x8xf32>,
    %c0_36 = arith.constant 0 : index
    %c0_37 = arith.constant 0 : index
    %108 = vector.load %arg6[%c0_36, %c0_37] : memref<8x32xf32, #tpu.memory_space<vmem>>, vector<8x32xf32>
    %109 = vector.shape_cast %69 : vector<16x32xf32> to vector<2x8x32xf32>
    %cst_38 = arith.constant dense<0.000000e+00> : vector<8x32xf32>
    %110 = vector.multi_reduction <add>, %109, %cst_38 [0] : vector<2x8x32xf32> to vector<8x32xf32>
    %111 = arith.addf %108, %110 : vector<8x32xf32>
    %c0_39 = arith.constant 0 : index
    %c0_40 = arith.constant 0 : index
    %112 = vector.load %arg6[%c0_39, %c0_40] : memref<8x32xf32, #tpu.memory_space<vmem>>, vector<8x32xf32>
    tpu.vector_store %arg6[%c0_39, %c0_40], %111 {strides = array<i32>} : memref<8x32xf32, #tpu.memory_space<vmem>>, vector<8x32xf32>,
    %c0_41 = arith.constant 0 : index
    %c0_42 = arith.constant 0 : index
    %113 = vector.load %arg7[%c0_41, %c0_42] : memref<8x128xf32, #tpu.memory_space<vmem>>, vector<8x128xf32>
    %114 = vector.shape_cast %102 : vector<16x128xf32> to vector<2x8x128xf32>
    %cst_43 = arith.constant dense<0.000000e+00> : vector<8x128xf32>
    %115 = vector.multi_reduction <add>, %114, %cst_43 [0] : vector<2x8x128xf32> to vector<8x128xf32>
    %116 = arith.addf %113, %115 : vector<8x128xf32>
    %c0_44 = arith.constant 0 : index
    %c0_45 = arith.constant 0 : index
    %117 = vector.load %arg7[%c0_44, %c0_45] : memref<8x128xf32, #tpu.memory_space<vmem>>, vector<8x128xf32>
    tpu.vector_store %arg7[%c0_44, %c0_45], %116 {strides = array<i32>} : memref<8x128xf32, #tpu.memory_space<vmem>>, vector<8x128xf32>,
    return
  }
  func.func @transform_0(%arg0: i32) -> (i32, i32) {
    %c0_i32 = arith.constant 0 : i32
    %c0_i32_0 = arith.constant 0 : i32
    return %arg0, %c0_i32 : i32, i32
  }
  func.func @transform_1(%arg0: i32) -> (i32, i32) {
    %c0_i32 = arith.constant 0 : i32
    %c0_i32_0 = arith.constant 0 : i32
    return %arg0, %c0_i32 : i32, i32
  }
  func.func @transform_2(%arg0: i32) -> (i32, i32) {
    %c0_i32 = arith.constant 0 : i32
    %c0_i32_0 = arith.constant 0 : i32
    return %arg0, %c0_i32 : i32, i32
  }
  func.func @transform_3(%arg0: i32) -> (i32, i32) {
    %c0_i32 = arith.constant 0 : i32
    %c0_i32_0 = arith.constant 0 : i32
    return %arg0, %c0_i32 : i32, i32
  }
  func.func @transform_4(%arg0: i32) -> (i32, i32) {
    %c0_i32 = arith.constant 0 : i32
    %c0_i32_0 = arith.constant 0 : i32
    %c0_i32_1 = arith.constant 0 : i32
    return %c0_i32, %c0_i32_0 : i32, i32
  }
  func.func @transform_5(%arg0: i32) -> (i32, i32) {
    %c0_i32 = arith.constant 0 : i32
    %c0_i32_0 = arith.constant 0 : i32
    %c0_i32_1 = arith.constant 0 : i32
    return %c0_i32, %c0_i32_0 : i32, i32
  }
  func.func @transform_6(%arg0: i32) -> (i32, i32) {
    %c0_i32 = arith.constant 0 : i32
    %c0_i32_0 = arith.constant 0 : i32
    %c0_i32_1 = arith.constant 0 : i32
    return %c0_i32, %c0_i32_0 : i32, i32
  }
}

</mosaic_0001>

<llo_original>
// kernel: tpu_custom_call.1
$region0: #{tpu_custom_call.1}
  #allocation0 [shape = 'u32[]', space=smem, size = 0x4, offset = 0x4, fixed_abs, tag = 'smem constant byte address 0x4 - core index']
  #allocation1 [shape = 'u32[144,128]{1,0:T(1,128)}', space=vmem, size = 0x12000, scoped, tag = 'internal scratch']
  %s0 = inlined_call_operand.vmem [shape: f32[16,32], index: 0, kind: input, shape index: {}]
  %s1 = inlined_call_operand.hbm [shape: f32[16,32], index: 1, kind: input, shape index: {}]
  %s2 = inlined_call_operand.hbm [shape: f32[16,128], index: 2, kind: input, shape index: {}]
  %s3 = inlined_call_operand.vmem [shape: s32[16,8], index: 3, kind: input, shape index: {}]
  %s4 = inlined_call_operand.hbm [shape: f32[8,8], index: 4, kind: output, shape index: {0}]
  %s5 = inlined_call_operand.hbm [shape: f32[8,32], index: 5, kind: output, shape index: {1}]
  %s6 = inlined_call_operand.hbm [shape: f32[8,128], index: 6, kind: output, shape index: {2}]
  %7 = xla_tuple %s4, %s5, %s6
  %s8 = sld [smem:[#allocation0]]
  $region54: #{tpu_custom_call.1} parent=0
    _
  %s10 = ssub.s32 1, %s8
  %s11 = scalar_select 0, %s10, %s8
  $region1: #{tpu_custom_call.1} parent=0
    #allocation2 [shape = 'u8[8192]{0}', space=vmem, size = 0x2000, scoped, tag = 'input window, operand 1, single buffered']
    #allocation3 [shape = 's32[1]{0}', space=sflag, size = 0x4, scoped, tag = 'scoped memory for tpu_custom_call.1']
    #allocation4 [shape = 's32[1]{0}', space=sflag, size = 0x4, scoped, tag = 'scoped memory for tpu_custom_call.1']
    #allocation5 [shape = 'u8[8192]{0}', space=vmem, size = 0x2000, scoped, tag = 'input window, operand 2, single buffered']
    #allocation6 [shape = 's32[1]{0}', space=sflag, size = 0x4, scoped, tag = 'scoped memory for tpu_custom_call.1']
    #allocation7 [shape = 'u8[4096]{0}', space=vmem, size = 0x1000, scoped, tag = 'output window, operand 0, single buffered']
    #allocation8 [shape = 'u8[4096]{0}', space=vmem, size = 0x1000, scoped, tag = 'output window, operand 1, single buffered']
    #allocation9 [shape = 's32[1]{0}', space=sflag, size = 0x4, scoped, tag = 'scoped memory for tpu_custom_call.1']
    #allocation10 [shape = 'u8[4096]{0}', space=vmem, size = 0x1000, scoped, tag = 'output window, operand 2, single buffered']
    %12 = vsyncpa [#allocation3], 0
    %13 = vsyncpa [#allocation6], 0
    %14 = vsyncpa [#allocation4], 0
    %15 = vsyncpa [#allocation9], 0
    // Predicated region
    $region2: #{tpu_custom_call.1} parent=1 // pred_check
      _
    $region3: #{tpu_custom_call.1} parent=1 // pred_check_branch
      %17 = sbr.rel (0) target = $region5
    $region4: #{tpu_custom_call.1} parent=1 // pred_region
      _
    $region5: #{tpu_custom_call.1} parent=1 // pred_fallthru
      _
    // Predicated region
    $region6: #{tpu_custom_call.1} parent=1 // pred_check
      _
    $region7: #{tpu_custom_call.1} parent=1 // pred_check_branch
      %19 = sbr.rel (0) target = $region9
    $region8: #{tpu_custom_call.1} parent=1 // pred_region
      %s21 = ssub.s32 256, 256
      %22 = vsyncadd [#allocation3], %s21
      %s23 = sshll.u32 [#allocation2], 4
      %s24 = int_to_ptr.vmem [resolvable:$true] %s23
      %29 = dma.hbm_to_vmem [thread:$0]  %s1, 256, %s24, [#allocation3], 128, 128, 8
    $region9: #{tpu_custom_call.1} parent=1 // pred_fallthru
      _
    // Predicated region
    $region10: #{tpu_custom_call.1} parent=1 // pred_check
      _
    $region11: #{tpu_custom_call.1} parent=1 // pred_check_branch
      %31 = sbr.rel (0) target = $region13
    $region12: #{tpu_custom_call.1} parent=1 // pred_region
      %s33 = ssub.s32 256, 256
      %34 = vsyncadd [#allocation6], %s33
      %s35 = sshll.u32 [#allocation5], 4
      %s36 = int_to_ptr.vmem [resolvable:$true] %s35
      %41 = dma.hbm_to_vmem [thread:$0]  %s2, 256, %s36, [#allocation6], 128, 128, 8
    $region13: #{tpu_custom_call.1} parent=1 // pred_fallthru
      _
    // Predicated region
    $region14: #{tpu_custom_call.1} parent=1 // pred_check
      _
    $region15: #{tpu_custom_call.1} parent=1 // pred_check_branch
      %43 = sbr.rel (0) target = $region17
    $region16: #{tpu_custom_call.1} parent=1 // pred_region
      _
    $region17: #{tpu_custom_call.1} parent=1 // pred_fallthru
      _
    // Predicated region
    $region18: #{tpu_custom_call.1} parent=1 // pred_check
      _
    $region19: #{tpu_custom_call.1} parent=1 // pred_check_branch
      %45 = sbr.rel (0) target = $region21
    $region20: #{tpu_custom_call.1} parent=1 // pred_region
      %46 = dma.done [#allocation3], 256
    $region21: #{tpu_custom_call.1} parent=1 // pred_fallthru
      _
    // Predicated region
    $region22: #{tpu_custom_call.1} parent=1 // pred_check
      _
    $region23: #{tpu_custom_call.1} parent=1 // pred_check_branch
      %48 = sbr.rel (0) target = $region25
    $region24: #{tpu_custom_call.1} parent=1 // pred_region
      %49 = dma.done [#allocation6], 256
    $region25: #{tpu_custom_call.1} parent=1 // pred_fallthru
      _
    %p50 = scmp.eq.s32.totalorder 0, 0
    // Predicated region
    $region26: #{tpu_custom_call.1} parent=1 // pred_check
      %p51 = pneg %p50
    $region27: #{tpu_custom_call.1} parent=1 // pred_check_branch
      %53 = sbr.rel (%p51) target = $region29
    $region28: #{tpu_custom_call.1} parent=1 // pred_region
      %vm54 = vcmask 64512
      %55 = vst.msk [vmem:[#allocation7] sm:$0xff] %vm54, 0.0
      %vm56 = vcmask 261120
      %57 = vst.msk [vmem:[#allocation8] sm:$0xff] %vm56, 0.0
      %58 = vst [vmem:[#allocation10] sm:$0xff] 0.0
    $region29: #{tpu_custom_call.1} parent=1 // pred_fallthru
      _
    %v59 = vld [vmem:[%s3] sm:$0xff]
    %v60 = vld [vmem:[%s3 + $0x8] sm:$0xff]
    %vm61 = vcmp.gt.s32.totalorder %v59, 0
    %vm62 = vcmp.gt.s32.totalorder %v60, 0
    %v63 = vsel %vm61, 1, 0
    %v64 = vsel %vm62, 1, 0
    %v65 = vcvt.s32.f32 %v63
    %v66 = vcvt.s32.f32 %v64
    %vm67 = vcmp.gt.s32.totalorder %v59, 4294967295
    %vm68 = vcmp.gt.s32.totalorder %v60, 4294967295
    %v69 = vsel %vm67, 1, 0
    %v70 = vsel %vm68, 1, 0
    %v71 = vcvt.s32.f32 %v69
    %v72 = vcvt.s32.f32 %v70
    %v73 = vlaneseq
    %v74 = vand.u32 %v73, 127
    %v75 = vlaneseq
    %v76 = vshrl.u32 %v75, 7
    %v77 = vmul.u32 %v76, 16
    %vm78 = vcmp.ge.s32.totalorder %v74, %v77
    %v79 = vadd.s32 %v77, 16
    %vm80 = vcmp.lt.s32.totalorder %v74, %v79
    %vm81 = vmand %vm78, %vm80
    %v82 = vsel %vm81, 1, 0
    %v83 = vcvt.s32.f32 %v82
    %v84 = vmul.u32 %v76, 4
    %vm85 = vcmp.ge.s32.totalorder %v74, %v84
    %v86 = vadd.s32 %v84, 4
    %vm87 = vcmp.lt.s32.totalorder %v74, %v86
    %vm88 = vmand %vm85, %vm87
    %v89 = vsel %vm88, 1, 0
    %v90 = vcvt.s32.f32 %v89
    %v91 = vmul.u32 %v74, 16
    %v92 = vcvt.s32.f32 %v91
    %v93 = vcvt.s32.f32 %v59
    %v94 = vcvt.s32.f32 %v60
    %v95 = vadd.f32 %v93, %v92
    %v96 = vadd.f32 %v94, %v92
    %vm97 = vcmask 64512
    %v99 = vsel %vm97, %v95, 0
    %v102 = vsel %vm97, %v96, 0
    %104 = vmatprep.subr.mxu0 0.0
    %105 = vmatpush1.msra.mxu0 %v83
    %106 = vmatprep.subr.mxu0 0.0
    %107 = vmatpush1.msra.mxu0 0.0
    %108 = vmatprep.subr.mxu0 0.0
    %109 = vmatpush1.msra.mxu0 0.0
    %110 = vmatprep.subr.mxu0 0.0
    %111 = vmatpush1.msra.mxu0 0.0
    %112 = vmatprep.subr.mxu0 0.0
    %113 = vmatpush1.msra.mxu0 0.0
    %114 = vmatprep.subr.mxu0 0.0
    %115 = vmatpush1.msra.mxu0 0.0
    %116 = vmatprep.subr.mxu0 0.0
    %117 = vmatpush1.msra.mxu0 0.0
    %118 = vmatprep.subr.mxu0 0.0
    %119 = vmatpush1.msra.mxu0 0.0
    %120 = vmatprep.subr.mxu0 0.0
    %121 = vmatpush1.msra.mxu0 0.0
    %122 = vmatprep.subr.mxu0 0.0
    %123 = vmatpush1.msra.mxu0 0.0
    %124 = vmatprep.subr.mxu0 0.0
    %125 = vmatpush1.msra.mxu0 0.0
    %126 = vmatprep.subr.mxu0 0.0
    %127 = vmatpush1.msra.mxu0 0.0
    %128 = vmatprep.subr.mxu0 0.0
    %129 = vmatpush1.msra.mxu0 0.0
    %130 = vmatprep.subr.mxu0 0.0
    %131 = vmatpush1.msra.mxu0 0.0
    %132 = vmatprep.subr.mxu0 0.0
    %133 = vmatpush1.msra.mxu0 0.0
    %134 = vmatprep.subr.mxu0 0.0
    %135 = vmatpush1.msra.mxu0 0.0
    %136 = vmatprep.subr.mxu0 0.0
    %137 = vmatpush1.msra.mxu0 0.0
    %138 = vmatprep.subr.mxu0 0.0
    %139 = vmatpush1.msra.mxu0 0.0
    %140 = vmatprep.subr.mxu0 0.0
    %141 = vmatpush1.msra.mxu0 0.0
    %142 = vmatprep.subr.mxu0 0.0
    %143 = vmatpush1.msra.mxu0 0.0
    %144 = vmatprep.subr.mxu0 0.0
    %145 = vmatpush1.msra.mxu0 0.0
    %146 = vmatprep.subr.mxu0 0.0
    %147 = vmatpush1.msra.mxu0 0.0
    %148 = vmatprep.subr.mxu0 0.0
    %149 = vmatpush1.msra.mxu0 0.0
    %150 = vmatprep.subr.mxu0 0.0
    %151 = vmatpush1.msra.mxu0 0.0
    %152 = vmatprep.subr.mxu0 0.0
    %153 = vmatpush1.msra.mxu0 0.0
    %154 = vmatprep.subr.mxu0 0.0
    %155 = vmatpush1.msra.mxu0 0.0
    %156 = vmatprep.subr.mxu0 0.0
    %157 = vmatpush1.msra.mxu0 0.0
    %158 = vmatprep.subr.mxu0 0.0
    %159 = vmatpush1.msra.mxu0 0.0
    %160 = vmatprep.subr.mxu0 0.0
    %161 = vmatpush1.msra.mxu0 0.0
    %162 = vmatprep.subr.mxu0 0.0
    %163 = vmatpush1.msra.mxu0 0.0
    %164 = vmatprep.subr.mxu0 0.0
    %165 = vmatpush1.msra.mxu0 0.0
    %166 = vmatprep.subr.mxu0 0.0
    %167 = vmatpush1.msra.mxu0 0.0
    %168 = vmatprep.mubr.f32.mxu0 0.0
    %169 = vmatmul.mubr.f32.gmra.mrb[0].mxu0 %v99
    %v170 = vpop.f32.mrb[0].mxu0
    %v171 = vadd.f32 0.0, %v170
    %v172 = vpop.f32.mrb[0].mxu0
    %173 = vmatprep.mubr.f32.mxu0 0.0
    %174 = vmatmul.mubr.f32.gmra.mrb[0].mxu0 %v102
    %v175 = vpop.f32.mrb[0].mxu0
    %v176 = vadd.f32 0.0, %v175
    %v177 = vpop.f32.mrb[0].mxu0
    %178 = vdwg.mxu0
    %v180 = vsel %vm97, %v71, 0
    %v183 = vsel %vm97, %v72, 0
    %185 = vmatprep.subr.mxu0 0.0
    %186 = vmatpush1.msra.mxu0 %v83
    %187 = vmatprep.subr.mxu0 0.0
    %188 = vmatpush1.msra.mxu0 0.0
    %189 = vmatprep.subr.mxu0 0.0
    %190 = vmatpush1.msra.mxu0 0.0
    %191 = vmatprep.subr.mxu0 0.0
    %192 = vmatpush1.msra.mxu0 0.0
    %193 = vmatprep.subr.mxu0 0.0
    %194 = vmatpush1.msra.mxu0 0.0
    %195 = vmatprep.subr.mxu0 0.0
    %196 = vmatpush1.msra.mxu0 0.0
    %197 = vmatprep.subr.mxu0 0.0
    %198 = vmatpush1.msra.mxu0 0.0
    %199 = vmatprep.subr.mxu0 0.0
    %200 = vmatpush1.msra.mxu0 0.0
    %201 = vmatprep.subr.mxu0 0.0
    %202 = vmatpush1.msra.mxu0 0.0
    %203 = vmatprep.subr.mxu0 0.0
    %204 = vmatpush1.msra.mxu0 0.0
    %205 = vmatprep.subr.mxu0 0.0
    %206 = vmatpush1.msra.mxu0 0.0
    %207 = vmatprep.subr.mxu0 0.0
    %208 = vmatpush1.msra.mxu0 0.0
    %209 = vmatprep.subr.mxu0 0.0
    %210 = vmatpush1.msra.mxu0 0.0
    %211 = vmatprep.subr.mxu0 0.0
    %212 = vmatpush1.msra.mxu0 0.0
    %213 = vmatprep.subr.mxu0 0.0
    %214 = vmatpush1.msra.mxu0 0.0
    %215 = vmatprep.subr.mxu0 0.0
    %216 = vmatpush1.msra.mxu0 0.0
    %217 = vmatprep.subr.mxu0 0.0
    %218 = vmatpush1.msra.mxu0 0.0
    %219 = vmatprep.subr.mxu0 0.0
    %220 = vmatpush1.msra.mxu0 0.0
    %221 = vmatprep.subr.mxu0 0.0
    %222 = vmatpush1.msra.mxu0 0.0
    %223 = vmatprep.subr.mxu0 0.0
    %224 = vmatpush1.msra.mxu0 0.0
    %225 = vmatprep.subr.mxu0 0.0
    %226 = vmatpush1.msra.mxu0 0.0
    %227 = vmatprep.subr.mxu0 0.0
    %228 = vmatpush1.msra.mxu0 0.0
    %229 = vmatprep.subr.mxu0 0.0
    %230 = vmatpush1.msra.mxu0 0.0
    %231 = vmatprep.subr.mxu0 0.0
    %232 = vmatpush1.msra.mxu0 0.0
    %233 = vmatprep.subr.mxu0 0.0
    %234 = vmatpush1.msra.mxu0 0.0
    %235 = vmatprep.subr.mxu0 0.0
    %236 = vmatpush1.msra.mxu0 0.0
    %237 = vmatprep.subr.mxu0 0.0
    %238 = vmatpush1.msra.mxu0 0.0
    %239 = vmatprep.subr.mxu0 0.0
    %240 = vmatpush1.msra.mxu0 0.0
    %241 = vmatprep.subr.mxu0 0.0
    %242 = vmatpush1.msra.mxu0 0.0
    %243 = vmatprep.subr.mxu0 0.0
    %244 = vmatpush1.msra.mxu0 0.0
    %245 = vmatprep.subr.mxu0 0.0
    %246 = vmatpush1.msra.mxu0 0.0
    %247 = vmatprep.subr.mxu0 0.0
    %248 = vmatpush1.msra.mxu0 0.0
    %249 = vmatprep.mubr.f32.mxu0 0.0
    %250 = vmatmul.mubr.f32.gmra.mrb[0].mxu0 %v180
    %v251 = vpop.f32.mrb[0].mxu0
    %v252 = vadd.f32 0.0, %v251
    %v253 = vpop.f32.mrb[0].mxu0
    %254 = vmatprep.mubr.f32.mxu0 0.0
    %255 = vmatmul.mubr.f32.gmra.mrb[0].mxu0 %v183
    %v256 = vpop.f32.mrb[0].mxu0
    %v257 = vadd.f32 0.0, %v256
    %v258 = vpop.f32.mrb[0].mxu0
    %259 = vdwg.mxu0
    %vm260 = vcmp.gt.f32.partialorder %v252, 0.5
    %vm261 = vcmp.gt.f32.partialorder %v257, 0.5
    %v263 = vsel %vm97, %v65, 0
    %v266 = vsel %vm97, %v66, 0
    %268 = vmatprep.subr.mxu0 0.0
    %269 = vmatpush1.msra.mxu0 %v90
    %270 = vmatprep.subr.mxu0 0.0
    %271 = vmatpush1.msra.mxu0 0.0
    %272 = vmatprep.subr.mxu0 0.0
    %273 = vmatpush1.msra.mxu0 0.0
    %274 = vmatprep.subr.mxu0 0.0
    %275 = vmatpush1.msra.mxu0 0.0
    %276 = vmatprep.subr.mxu0 0.0
    %277 = vmatpush1.msra.mxu0 0.0
    %278 = vmatprep.subr.mxu0 0.0
    %279 = vmatpush1.msra.mxu0 0.0
    %280 = vmatprep.subr.mxu0 0.0
    %281 = vmatpush1.msra.mxu0 0.0
    %282 = vmatprep.subr.mxu0 0.0
    %283 = vmatpush1.msra.mxu0 0.0
    %284 = vmatprep.subr.mxu0 0.0
    %285 = vmatpush1.msra.mxu0 0.0
    %286 = vmatprep.subr.mxu0 0.0
    %287 = vmatpush1.msra.mxu0 0.0
    %288 = vmatprep.subr.mxu0 0.0
    %289 = vmatpush1.msra.mxu0 0.0
    %290 = vmatprep.subr.mxu0 0.0
    %291 = vmatpush1.msra.mxu0 0.0
    %292 = vmatprep.subr.mxu0 0.0
    %293 = vmatpush1.msra.mxu0 0.0
    %294 = vmatprep.subr.mxu0 0.0
    %295 = vmatpush1.msra.mxu0 0.0
    %296 = vmatprep.subr.mxu0 0.0
    %297 = vmatpush1.msra.mxu0 0.0
    %298 = vmatprep.subr.mxu0 0.0
    %299 = vmatpush1.msra.mxu0 0.0
    %300 = vmatprep.subr.mxu0 0.0
    %301 = vmatpush1.msra.mxu0 0.0
    %302 = vmatprep.subr.mxu0 0.0
    %303 = vmatpush1.msra.mxu0 0.0
    %304 = vmatprep.subr.mxu0 0.0
    %305 = vmatpush1.msra.mxu0 0.0
    %306 = vmatprep.subr.mxu0 0.0
    %307 = vmatpush1.msra.mxu0 0.0
    %308 = vmatprep.subr.mxu0 0.0
    %309 = vmatpush1.msra.mxu0 0.0
    %310 = vmatprep.subr.mxu0 0.0
    %311 = vmatpush1.msra.mxu0 0.0
    %312 = vmatprep.subr.mxu0 0.0
    %313 = vmatpush1.msra.mxu0 0.0
    %314 = vmatprep.subr.mxu0 0.0
    %315 = vmatpush1.msra.mxu0 0.0
    %316 = vmatprep.subr.mxu0 0.0
    %317 = vmatpush1.msra.mxu0 0.0
    %318 = vmatprep.subr.mxu0 0.0
    %319 = vmatpush1.msra.mxu0 0.0
    %320 = vmatprep.subr.mxu0 0.0
    %321 = vmatpush1.msra.mxu0 0.0
    %322 = vmatprep.subr.mxu0 0.0
    %323 = vmatpush1.msra.mxu0 0.0
    %324 = vmatprep.subr.mxu0 0.0
    %325 = vmatpush1.msra.mxu0 0.0
    %326 = vmatprep.subr.mxu0 0.0
    %327 = vmatpush1.msra.mxu0 0.0
    %328 = vmatprep.subr.mxu0 0.0
    %329 = vmatpush1.msra.mxu0 0.0
    %330 = vmatprep.subr.mxu0 0.0
    %331 = vmatpush1.msra.mxu0 0.0
    %332 = vmatprep.mubr.f32.mxu0 0.0
    %333 = vmatmul.mubr.f32.gmra.mrb[0].mxu0 %v263
    %v334 = vpop.f32.mrb[0].mxu0
    %v335 = vadd.f32 0.0, %v334
    %v336 = vpop.f32.mrb[0].mxu0
    %337 = vmatprep.mubr.f32.mxu0 0.0
    %338 = vmatmul.mubr.f32.gmra.mrb[0].mxu0 %v266
    %v339 = vpop.f32.mrb[0].mxu0
    %v340 = vadd.f32 0.0, %v339
    %v341 = vpop.f32.mrb[0].mxu0
    %342 = vdwg.mxu0
    %vm343 = vcmp.gt.f32.partialorder %v335, 0.5
    %vm344 = vcmp.gt.f32.partialorder %v340, 0.5
    %v345 = vadd.s32 %v74, 1
    %v346 = vcvt.s32.f32 %v345
    %vm347 = vcmp.eq.f32.partialorder %v171, %v346
    %vm348 = vcmp.eq.f32.partialorder %v176, %v346
    %v349 = vsel %vm347, 1, 0
    %v350 = vsel %vm348, 1, 0
    %v351 = vcvt.s32.f32 %v349
    %v352 = vcvt.s32.f32 %v350
    %v353 = vld [vmem:[%s0] sm:$0xff]
    %v354 = vld [vmem:[%s0 + $0x8] sm:$0xff]
    %v355 = vld [vmem:[#allocation2] sm:$0xff]
    %v356 = vld [vmem:[#allocation2 + $0x8] sm:$0xff]
    %v357 = vsub.f32 %v353, %v355
    %v358 = vsub.f32 %v354, %v356
    %v359 = vand.u32 2147483647, %v357
    %v360 = vand.u32 2147483647, %v358
    %vm361 = vcmp.lt.f32.partialorder %v359, 1.0
    %vm362 = vcmp.lt.f32.partialorder %v360, 1.0
    %v363 = vmul.f32 %v357, 0.5
    %v364 = vmul.f32 %v358, 0.5
    %v365 = vmul.f32 %v363, %v357
    %v366 = vmul.f32 %v364, %v358
    %v367 = vsub.f32 %v359, 0.5
    %v368 = vsub.f32 %v360, 0.5
    %v369 = vsel %vm361, %v365, %v367
    %v370 = vsel %vm362, %v366, %v368
    %v371 = vsel %vm343, %v369, 0.0
    %v372 = vsel %vm344, %v370, 0.0
    %v373 = vld [vmem:[#allocation5] sm:$0xff]
    %v374 = vld [vmem:[#allocation5 + $0x8] sm:$0xff]
    %v375 = vsel %vm260, %v373, 0.0
    %v376 = vsel %vm261, %v374, 0.0
    %v377 = vmul.f32 %v351, 2.0
    %v378 = vmul.f32 %v352, 2.0
    %v379 = vsub.f32 %v377, 1.0
    %v380 = vsub.f32 %v378, 1.0
    %v381 = vmul.f32 %v375, %v379
    %v382 = vmul.f32 %v376, %v380
    %v383 = vsub.f32 0.0, %v381
    %v384 = vsub.f32 0.0, %v382
    %v385 = vmax.f32 %v383, 0.0
    %v386 = vmax.f32 %v384, 0.0
    %v387 = vand.u32 2147483647, %v381
    %v388 = vand.u32 2147483647, %v382
    %v389 = vsub.f32 0.0, %v387
    %v390 = vsub.f32 0.0, %v388
    %v391 = vmul.f32 %v389, 1.442695
    %v392 = vpow.pop %v391
    %v393 = vmul.f32 %v390, 1.442695
    %v394 = vpow.pop %v393
    %v395 = vadd.f32 %v392, 1.0
    %v396 = vadd.f32 %v394, 1.0
    %v397 = vlog2.pop %v395
    %v398 = vmul.f32 %v397, 0.6931472
    %v399 = vlog2.pop %v396
    %v400 = vmul.f32 %v399, 0.6931472
    %v401 = vadd.f32 %v385, %v398
    %v402 = vadd.f32 %v386, %v400
    %v403 = vadd.f32 %v401, %v381
    %v404 = vadd.f32 %v402, %v382
    %v405 = vsub.f32 0.0, %v403
    %v406 = vsub.f32 0.0, %v404
    %v407 = vmul.f32 %v405, 1.442695
    %v408 = vpow.pop %v407
    %v409 = vmul.f32 %v406, 1.442695
    %v410 = vpow.pop %v409
    %v411 = vmul.f32 %v408, %v408
    %v412 = vmul.f32 %v410, %v410
    %v413 = vmul.f32 %v351, -0.5
    %v414 = vmul.f32 %v352, -0.5
    %v415 = vadd.f32 %v413, 0.75
    %v416 = vadd.f32 %v414, 0.75
    %v417 = vmul.f32 %v415, %v411
    %v418 = vmul.f32 %v416, %v412
    %v419 = vmul.f32 %v417, %v401
    %v420 = vmul.f32 %v418, %v402
    %v421 = vsel %vm260, %v419, 0.0
    %v422 = vsel %vm261, %v420, 0.0
    %v423 = vld [vmem:[#allocation7] sm:$0xff]
    %v424 = vsel %vm97, %v65, 0.0
    %v425 = vsel %vm97, %v66, 0.0
    %v426 = vadd.f32 %v424, %v425
    %v427 = vadd.f32 %v423, %v426
    %428 = vst.msk [vmem:[#allocation7] sm:$0xff] %vm97, %v427
    %v429 = vld [vmem:[#allocation8] sm:$0xff]
    %vm430 = vcmask 261120
    %v431 = vsel %vm430, %v371, 0.0
    %v432 = vsel %vm430, %v372, 0.0
    %v433 = vadd.f32 %v431, %v432
    %v434 = vadd.f32 %v429, %v433
    %435 = vst.msk [vmem:[#allocation8] sm:$0xff] %vm430, %v434
    %v436 = vld [vmem:[#allocation10] sm:$0xff]
    %v437 = vadd.f32 %v421, %v422
    %v438 = vadd.f32 %v436, %v437
    %439 = vst [vmem:[#allocation10] sm:$0xff] %v438
    // Predicated region
    $region30: #{tpu_custom_call.1} parent=1 // pred_check
      _
    $region31: #{tpu_custom_call.1} parent=1 // pred_check_branch
      %441 = sbr.rel (0) target = $region33
    $region32: #{tpu_custom_call.1} parent=1 // pred_region
      %s443 = ssub.s32 128, 128
      %444 = vsyncadd [#allocation4], %s443
      %s446 = sshll.u32 [#allocation7], 4
      %s447 = int_to_ptr.vmem [resolvable:$true] %s446
      %449 = dma.vmem_to_hbm [thread:$0]  %s447, 128, %s4, [#allocation4]
    $region33: #{tpu_custom_call.1} parent=1 // pred_fallthru
      _
    // Predicated region
    $region34: #{tpu_custom_call.1} parent=1 // pred_check
      _
    $region35: #{tpu_custom_call.1} parent=1 // pred_check_branch
      %451 = sbr.rel (0) target = $region37
    $region36: #{tpu_custom_call.1} parent=1 // pred_region
      %s453 = ssub.s32 128, 128
      %454 = vsyncadd [#allocation9], %s453
      %s456 = sshll.u32 [#allocation8], 4
      %s457 = int_to_ptr.vmem [resolvable:$true] %s456
      %459 = dma.vmem_to_hbm [thread:$0]  %s457, 128, %s5, [#allocation9]
    $region37: #{tpu_custom_call.1} parent=1 // pred_fallthru
      _
    // Predicated region
    $region38: #{tpu_custom_call.1} parent=1 // pred_check
      _
    $region39: #{tpu_custom_call.1} parent=1 // pred_check_branch
      %461 = sbr.rel (0) target = $region41
    $region40: #{tpu_custom_call.1} parent=1 // pred_region
      %s463 = ssub.s32 128, 128
      %464 = vsyncadd [#allocation9], %s463
      %s466 = sshll.u32 [#allocation10], 4
      %s467 = int_to_ptr.vmem [resolvable:$true] %s466
      %469 = dma.vmem_to_hbm [thread:$0]  %s467, 128, %s6, [#allocation9]
    $region41: #{tpu_custom_call.1} parent=1 // pred_fallthru
      _
    // Predicated region
    $region42: #{tpu_custom_call.1} parent=1 // pred_check
      _
    $region43: #{tpu_custom_call.1} parent=1 // pred_check_branch
      %471 = sbr.rel (0) target = $region45
    $region44: #{tpu_custom_call.1} parent=1 // pred_region
      %472 = dma.done [#allocation4], 128
    $region45: #{tpu_custom_call.1} parent=1 // pred_fallthru
      _
    // Predicated region
    $region46: #{tpu_custom_call.1} parent=1 // pred_check
      _
    $region47: #{tpu_custom_call.1} parent=1 // pred_check_branch
      %474 = sbr.rel (0) target = $region49
    $region48: #{tpu_custom_call.1} parent=1 // pred_region
      %475 = dma.done [#allocation9], 128
    $region49: #{tpu_custom_call.1} parent=1 // pred_fallthru
      _
    // Predicated region
    $region50: #{tpu_custom_call.1} parent=1 // pred_check
      _
    $region51: #{tpu_custom_call.1} parent=1 // pred_check_branch
      %477 = sbr.rel (0) target = $region53
    $region52: #{tpu_custom_call.1} parent=1 // pred_region
      %478 = dma.done [#allocation9], 128
    $region53: #{tpu_custom_call.1} parent=1 // pred_fallthru
      _
    %479 = vsyncpa [#allocation3], 1
    %480 = vsyncpa [#allocation6], 1
    %481 = vsyncpa [#allocation4], 1
    %482 = vsyncpa [#allocation9], 1

</llo_original>
